<compile_context>
chip_gen: v7x
topology: tpu7x:2x2x1
jax: 0.10.0
libtpu: 0.0.40
codegen_flags: <defaults>
</compile_context>

<pallas_src>
import functools

import jax
import jax.numpy as jnp
from jax.experimental import pallas as pl
from jax.experimental.pallas import tpu as pltpu

LANE = 128


def _round_up(x, m):
    return (x + m - 1) // m * m


# ----------------------------- Pallas kernel -----------------------------

def _graphsage_fused_kernel(*refs, num_layers):
    """All GraphSAGE 'mean' layers fused; activations stay in VMEM/vregs.

    refs = (adj, x, W_0, b_0, W_1, b_1, ..., W_{L-1}, b_{L-1}, out)
      adj: (N, N)               bf16  normalized adjacency
      x:   (N, Fp_0)            bf16  lane-padded node features
      W_l: (Fp_l, Fp_{l+1})     bf16  per-layer padded, pre-transposed weights
      b_l: (1, Fp_{l+1})        f32   per-layer padded bias row
      out: (N, Fp_L)            f32   padded output (lane-dense stores)
    """
    adj_ref, x_ref = refs[0], refs[1]
    o_ref = refs[-1]
    layer_refs = refs[2:-1]

    adj = adj_ref[...]                       # (N, N)    bf16
    h = x_ref[...]                           # (N, Fp_0) bf16
    out = None
    for l in range(num_layers):              # static unrolled layer loop
        w = layer_refs[2 * l][...]           # (Fp_l, Fp_{l+1}) bf16
        b = layer_refs[2 * l + 1][...]       # (1, Fp_{l+1})    f32
        # A @ (X @ W) == (A @ X) @ W: project first so the N^2-scaled
        # aggregation matmul runs over the per-layer padded *output* width
        # (narrower on the final layer once padding is per-layer).
        proj = jnp.dot(h, w, preferred_element_type=jnp.float32)
        agg = jnp.dot(adj, proj.astype(jnp.bfloat16),
                      preferred_element_type=jnp.float32)
        out = agg + b                        # f32 epilogue
        if l < num_layers - 1:
            out = jnp.maximum(out, 0.0)      # ReLU between layers
            # F.dropout(p=0.5, training=False) is identity in eval mode.
            h = out.astype(jnp.bfloat16)
    o_ref[...] = out.astype(o_ref.dtype)


# ------------------------------ JAX glue ---------------------------------

def make_adj_normalized(edge_index, n_nodes):
    """Dense adjacency then D^{-1/2} A D^{-1/2} (D = diag of *column* sums),
    matching GraphSAGEConvolution._make_adj.  Degree clamp avoids inf/NaN for
    isolated nodes (reference would emit inf); .add keeps duplicate-edge
    multiplicity."""
    src, dst = edge_index[0], edge_index[1]
    adj = jnp.zeros((n_nodes, n_nodes), jnp.float32).at[src, dst].add(1.0)
    deg = jnp.sum(adj, axis=0)
    d_inv_sqrt = jnp.where(deg > 0, 1.0 / jnp.sqrt(jnp.maximum(deg, 1e-12)), 0.0)
    return d_inv_sqrt[:, None] * adj * d_inv_sqrt[None, :]


def init_linear(key, in_features, out_features):
    """Deterministic nn.Linear-style init. Returns (W_transposed, bias_row)."""
    kw, kb = jax.random.split(key)
    bound = 1.0 / jnp.sqrt(jnp.float32(in_features))
    w = jax.random.uniform(kw, (out_features, in_features), jnp.float32,
                           minval=-bound, maxval=bound)
    b = jax.random.uniform(kb, (out_features,), jnp.float32,
                           minval=-bound, maxval=bound)
    return w.T, b.reshape(1, out_features)


def make_graphsage_forward(edge_index, n_nodes, params):
    """One-time setup (cached adjacency + padded/laid-out params), returns a
    jitted forward(x) -> (N, out_dim).  All padding/stacking cost is paid here,
    not per call."""
    num_layers = len(params)
    out_dim = params[-1][0].shape[1]
    in_dim = params[0][0].shape[0]

    # Cached normalized adjacency (mirrors the module's lazy _make_adj).
    adj_norm = make_adj_normalized(edge_index, n_nodes).astype(jnp.bfloat16)

    # Per-layer lane padding: each in/out width rounded to 128 independently.
    dims = [in_dim] + [w.shape[1] for w, _ in params]
    pdims = [_round_up(d, LANE) for d in dims]

    w_pad_list, b_pad_list = [], []
    for l, (w_t, b_row) in enumerate(params):
        fi, fo = w_t.shape
        w_p = jnp.zeros((pdims[l], pdims[l + 1]), jnp.bfloat16)
        w_p = w_p.at[:fi, :fo].set(w_t.astype(jnp.bfloat16))
        b_p = jnp.zeros((1, pdims[l + 1]), jnp.float32)
        b_p = b_p.at[:, :fo].set(b_row)
        w_pad_list.append(w_p)
        b_pad_list.append(b_p)

    # VMEM budget sized from the actual resident set (single-buffered
    # whole-array blocks) + 2x headroom, clamped to a sane range.
    resident_bytes = (
        n_nodes * n_nodes * 2                                           # adj bf16
        + n_nodes * pdims[0] * 2                                        # x_pad bf16
        + sum(pdims[l] * pdims[l + 1] * 2 for l in range(num_layers))   # W bf16
        + sum(pdims[l + 1] * 4 for l in range(num_layers))              # b f32
        + n_nodes * pdims[-1] * 4                                       # out f32
    )
    vmem_limit = int(min(max(2 * resident_bytes + (1 << 20), 8 << 20), 100 << 20))

    kernel = functools.partial(_graphsage_fused_kernel, num_layers=num_layers)
    vmem_spec = pl.BlockSpec(memory_space=pltpu.MemorySpace.VMEM)
    n_inputs = 2 + 2 * num_layers

    fused = pl.pallas_call(
        kernel,
        out_shape=jax.ShapeDtypeStruct((n_nodes, pdims[-1]), jnp.float32),
        in_specs=[vmem_spec] * n_inputs,
        out_specs=vmem_spec,
        compiler_params=pltpu.CompilerParams(vmem_limit_bytes=vmem_limit),
    )

    layer_inputs = []
    for l in range(num_layers):
        layer_inputs += [w_pad_list[l], b_pad_list[l]]

    fp0 = pdims[0]

    @jax.jit
    def forward(x):
        # Hot path: lane-pad x, one fused kernel, slice off padding.
        x_pad = jnp.pad(x.astype(jnp.bfloat16),
                        ((0, 0), (0, fp0 - x.shape[1])))
        out_pad = fused(adj_norm, x_pad, *layer_inputs)
        return out_pad[:, :out_dim]

    return forward


# ------------------------------- main -------------------------------------

if __name__ == "__main__":
    N_NODES = 16
    INPUT_DIM = 8
    HIDDEN_DIM = 32
    OUTPUT_DIM = 4
    NUM_LAYERS = 3

    key = jax.random.PRNGKey(0)
    k_x, k_p = jax.random.split(key)

    # node features
    x = jax.random.normal(k_x, (N_NODES, INPUT_DIM), jnp.float32)

    # bidirectional ring graph -> every node has in-degree 2
    nodes = jnp.arange(N_NODES, dtype=jnp.int32)
    src = jnp.concatenate([nodes, nodes])
    dst = jnp.concatenate([(nodes + 1) % N_NODES, (nodes - 1) % N_NODES])
    edge_index = jnp.stack([src, dst], axis=0)  # (2, E)

    # per-layer Linear parameters: in->hidden, hidden->hidden, hidden->out
    dims = [INPUT_DIM] + [HIDDEN_DIM] * (NUM_LAYERS - 1) + [OUTPUT_DIM]
    keys = jax.random.split(k_p, NUM_LAYERS)
    params = [init_linear(keys[i], dims[i], dims[i + 1])
              for i in range(NUM_LAYERS)]

    forward = make_graphsage_forward(edge_index, N_NODES, params)
    out = jax.block_until_ready(forward(x))
    assert out.shape == (N_NODES, OUTPUT_DIM)

    # --- reference 1: same mixed precision + associativity as the kernel ---
    adj_bf = make_adj_normalized(edge_index, N_NODES).astype(jnp.bfloat16)
    h = x.astype(jnp.bfloat16)
    ref_mixed = None
    for l, (w_t, b_row) in enumerate(params):
        proj = jnp.dot(h, w_t.astype(jnp.bfloat16),
                       preferred_element_type=jnp.float32)
        agg = jnp.dot(adj_bf, proj.astype(jnp.bfloat16),
                      preferred_element_type=jnp.float32)
        ref_mixed = agg + b_row
        if l < NUM_LAYERS - 1:
            ref_mixed = jnp.maximum(ref_mixed, 0.0)
            h = ref_mixed.astype(jnp.bfloat16)
    assert jnp.allclose(out, ref_mixed, atol=1e-2, rtol=1e-2)

    # --- reference 2: original f32 module semantics (looser tol for bf16) ---
    adj_f32 = make_adj_normalized(edge_index, N_NODES)
    ref = x
    for l, (w_t, b_row) in enumerate(params):
        ref = adj_f32 @ ref @ w_t + b_row
        if l < NUM_LAYERS - 1:
            ref = jnp.maximum(ref, 0.0)
    assert jnp.allclose(out, ref, atol=5e-2, rtol=5e-2)

    print("KERNEL_OK")
</pallas_src>

<mosaic_0001>
module attributes {stable_mosaic.version = 11 : i64} {
  func.func @_graphsage_fused_kernel(%arg0: memref<16x16xbf16, #tpu.memory_space<vmem>>, %arg1: memref<16x128xbf16, #tpu.memory_space<vmem>>, %arg2: memref<128x128xbf16, #tpu.memory_space<vmem>>, %arg3: memref<1x128xf32, #tpu.memory_space<vmem>>, %arg4: memref<128x128xbf16, #tpu.memory_space<vmem>>, %arg5: memref<1x128xf32, #tpu.memory_space<vmem>>, %arg6: memref<128x128xbf16, #tpu.memory_space<vmem>>, %arg7: memref<1x128xf32, #tpu.memory_space<vmem>>, %arg8: memref<16x128xf32, #tpu.memory_space<vmem>>) attributes {dimension_semantics = [], scalar_prefetch = 0 : i64, scratch_operands = 0 : i64, tpu.core_type = #tpu.core_type<tc>} {
    %c0 = arith.constant 0 : index
    %c0_0 = arith.constant 0 : index
    %0 = vector.load %arg0[%c0, %c0_0] : memref<16x16xbf16, #tpu.memory_space<vmem>>, vector<16x16xbf16>
    %c0_1 = arith.constant 0 : index
    %c0_2 = arith.constant 0 : index
    %1 = vector.load %arg1[%c0_1, %c0_2] : memref<16x128xbf16, #tpu.memory_space<vmem>>, vector<16x128xbf16>
    %c0_3 = arith.constant 0 : index
    %c0_4 = arith.constant 0 : index
    %2 = vector.load %arg2[%c0_3, %c0_4] : memref<128x128xbf16, #tpu.memory_space<vmem>>, vector<128x128xbf16>
    %c0_5 = arith.constant 0 : index
    %c0_6 = arith.constant 0 : index
    %3 = vector.load %arg3[%c0_5, %c0_6] : memref<1x128xf32, #tpu.memory_space<vmem>>, vector<1x128xf32>
    %cst = arith.constant dense<0.000000e+00> : vector<16x128xf32>
    %4 = tpu.matmul %1, %2, %cst {dimension_numbers = #tpu.dot_dimension_numbers<[1], [0], [0], [1], [0, 0, 1, 1], [], []>} : vector<16x128xbf16>, vector<128x128xbf16>, vector<16x128xf32> -> vector<16x128xf32>
    %5 = arith.truncf %4 : vector<16x128xf32> to vector<16x128xbf16>
    %cst_7 = arith.constant dense<0.000000e+00> : vector<16x128xf32>
    %6 = tpu.matmul %0, %5, %cst_7 {dimension_numbers = #tpu.dot_dimension_numbers<[1], [0], [0], [1], [0, 0, 1, 1], [], []>} : vector<16x16xbf16>, vector<16x128xbf16>, vector<16x128xf32> -> vector<16x128xf32>
    %7 = vector.broadcast %3 : vector<1x128xf32> to vector<16x128xf32>
    %8 = arith.addf %6, %7 : vector<16x128xf32>
    %cst_8 = arith.constant 0.000000e+00 : f32
    %9 = vector.broadcast %cst_8 : f32 to vector<16x128xf32>
    %10 = arith.maximumf %8, %9 : vector<16x128xf32>
    %11 = arith.truncf %10 : vector<16x128xf32> to vector<16x128xbf16>
    %c0_9 = arith.constant 0 : index
    %c0_10 = arith.constant 0 : index
    %12 = vector.load %arg4[%c0_9, %c0_10] : memref<128x128xbf16, #tpu.memory_space<vmem>>, vector<128x128xbf16>
    %c0_11 = arith.constant 0 : index
    %c0_12 = arith.constant 0 : index
    %13 = vector.load %arg5[%c0_11, %c0_12] : memref<1x128xf32, #tpu.memory_space<vmem>>, vector<1x128xf32>
    %cst_13 = arith.constant dense<0.000000e+00> : vector<16x128xf32>
    %14 = tpu.matmul %11, %12, %cst_13 {dimension_numbers = #tpu.dot_dimension_numbers<[1], [0], [0], [1], [0, 0, 1, 1], [], []>} : vector<16x128xbf16>, vector<128x128xbf16>, vector<16x128xf32> -> vector<16x128xf32>
    %15 = arith.truncf %14 : vector<16x128xf32> to vector<16x128xbf16>
    %cst_14 = arith.constant dense<0.000000e+00> : vector<16x128xf32>
    %16 = tpu.matmul %0, %15, %cst_14 {dimension_numbers = #tpu.dot_dimension_numbers<[1], [0], [0], [1], [0, 0, 1, 1], [], []>} : vector<16x16xbf16>, vector<16x128xbf16>, vector<16x128xf32> -> vector<16x128xf32>
    %17 = vector.broadcast %13 : vector<1x128xf32> to vector<16x128xf32>
    %18 = arith.addf %16, %17 : vector<16x128xf32>
    %cst_15 = arith.constant 0.000000e+00 : f32
    %19 = vector.broadcast %cst_15 : f32 to vector<16x128xf32>
    %20 = arith.maximumf %18, %19 : vector<16x128xf32>
    %21 = arith.truncf %20 : vector<16x128xf32> to vector<16x128xbf16>
    %c0_16 = arith.constant 0 : index
    %c0_17 = arith.constant 0 : index
    %22 = vector.load %arg6[%c0_16, %c0_17] : memref<128x128xbf16, #tpu.memory_space<vmem>>, vector<128x128xbf16>
    %c0_18 = arith.constant 0 : index
    %c0_19 = arith.constant 0 : index
    %23 = vector.load %arg7[%c0_18, %c0_19] : memref<1x128xf32, #tpu.memory_space<vmem>>, vector<1x128xf32>
    %cst_20 = arith.constant dense<0.000000e+00> : vector<16x128xf32>
    %24 = tpu.matmul %21, %22, %cst_20 {dimension_numbers = #tpu.dot_dimension_numbers<[1], [0], [0], [1], [0, 0, 1, 1], [], []>} : vector<16x128xbf16>, vector<128x128xbf16>, vector<16x128xf32> -> vector<16x128xf32>
    %25 = arith.truncf %24 : vector<16x128xf32> to vector<16x128xbf16>
    %cst_21 = arith.constant dense<0.000000e+00> : vector<16x128xf32>
    %26 = tpu.matmul %0, %25, %cst_21 {dimension_numbers = #tpu.dot_dimension_numbers<[1], [0], [0], [1], [0, 0, 1, 1], [], []>} : vector<16x16xbf16>, vector<16x128xbf16>, vector<16x128xf32> -> vector<16x128xf32>
    %27 = vector.broadcast %23 : vector<1x128xf32> to vector<16x128xf32>
    %28 = arith.addf %26, %27 : vector<16x128xf32>
    %c0_22 = arith.constant 0 : index
    %c0_23 = arith.constant 0 : index
    %29 = vector.load %arg8[%c0_22, %c0_23] : memref<16x128xf32, #tpu.memory_space<vmem>>, vector<16x128xf32>
    tpu.vector_store %arg8[%c0_22, %c0_23], %28 {strides = array<i32>} : memref<16x128xf32, #tpu.memory_space<vmem>>, vector<16x128xf32>,
    return
  }
}

</mosaic_0001>

<llo_original>
// kernel: forward.1
$region0: #{forward.1}
  #allocation0 [shape = 'u32[]', space=smem, size = 0x4, offset = 0x4, fixed_abs, tag = 'smem constant byte address 0x4 - core index']
  #allocation1 [shape = 'u32[144,128]{1,0:T(1,128)}', space=vmem, size = 0x12000, scoped, tag = 'internal scratch']
  %s0 = inlined_call_operand.vmem [shape: bf16[16,16], index: 0, kind: input, shape index: {}]
  %s1 = inlined_call_operand.vmem [shape: bf16[16,128], index: 1, kind: input, shape index: {}]
  %s2 = inlined_call_operand.hbm [shape: bf16[128,128], index: 2, kind: input, shape index: {}]
  %s3 = inlined_call_operand.vmem [shape: f32[1,128], index: 3, kind: input, shape index: {}]
  %s4 = inlined_call_operand.hbm [shape: bf16[128,128], index: 4, kind: input, shape index: {}]
  %s5 = inlined_call_operand.vmem [shape: f32[1,128], index: 5, kind: input, shape index: {}]
  %s6 = inlined_call_operand.vmem [shape: bf16[128,128], index: 6, kind: input, shape index: {}]
  %s7 = inlined_call_operand.vmem [shape: f32[1,128], index: 7, kind: input, shape index: {}]
  %s8 = inlined_call_operand.vmem [shape: f32[16,128], index: 8, kind: output, shape index: {}]
  %s9 = sld [smem:[#allocation0]]
  $region50: #{forward.1} parent=0
    _
  %s11 = ssub.s32 1, %s9
  %s12 = scalar_select 0, %s11, %s9
  $region1: #{forward.1} parent=0
    #allocation2 [shape = 'u8[32768]{0}', space=vmem, size = 0x8000, scoped, tag = 'input window, operand 2, single buffered']
    #allocation3 [shape = 's32[1]{0}', space=sflag, size = 0x4, scoped, tag = 'scoped memory for forward.1']
    #allocation4 [shape = 'u8[32768]{0}', space=vmem, size = 0x8000, scoped, tag = 'input window, operand 4, single buffered']
    #allocation5 [shape = 's32[1]{0}', space=sflag, size = 0x4, scoped, tag = 'scoped memory for forward.1']
    %13 = vsyncpa [#allocation3], 0
    %14 = vsyncpa [#allocation5], 0
    // Predicated region
    $region2: #{forward.1} parent=1 // pred_check
      _
    $region3: #{forward.1} parent=1 // pred_check_branch
      %16 = sbr.rel (0) target = $region5
    $region4: #{forward.1} parent=1 // pred_region
      _
    $region5: #{forward.1} parent=1 // pred_fallthru
      _
    // Predicated region
    $region6: #{forward.1} parent=1 // pred_check
      _
    $region7: #{forward.1} parent=1 // pred_check_branch
      %18 = sbr.rel (0) target = $region9
    $region8: #{forward.1} parent=1 // pred_region
      _
    $region9: #{forward.1} parent=1 // pred_fallthru
      _
    // Predicated region
    $region10: #{forward.1} parent=1 // pred_check
      _
    $region11: #{forward.1} parent=1 // pred_check_branch
      %20 = sbr.rel (0) target = $region13
    $region12: #{forward.1} parent=1 // pred_region
      %s22 = ssub.s32 1024, 1024
      %23 = vsyncadd [#allocation3], %s22
      %s24 = sshll.u32 [#allocation2], 4
      %s25 = int_to_ptr.vmem [resolvable:$true] %s24
      %30 = dma.hbm_to_vmem [thread:$0]  %s2, 1024, %s25, [#allocation3], 64, 64, 4
    $region13: #{forward.1} parent=1 // pred_fallthru
      _
    // Predicated region
    $region14: #{forward.1} parent=1 // pred_check
      _
    $region15: #{forward.1} parent=1 // pred_check_branch
      %32 = sbr.rel (0) target = $region17
    $region16: #{forward.1} parent=1 // pred_region
      _
    $region17: #{forward.1} parent=1 // pred_fallthru
      _
    // Predicated region
    $region18: #{forward.1} parent=1 // pred_check
      _
    $region19: #{forward.1} parent=1 // pred_check_branch
      %34 = sbr.rel (0) target = $region21
    $region20: #{forward.1} parent=1 // pred_region
      %s36 = ssub.s32 1024, 1024
      %37 = vsyncadd [#allocation5], %s36
      %s38 = sshll.u32 [#allocation4], 4
      %s39 = int_to_ptr.vmem [resolvable:$true] %s38
      %44 = dma.hbm_to_vmem [thread:$0]  %s4, 1024, %s39, [#allocation5], 64, 64, 4
    $region21: #{forward.1} parent=1 // pred_fallthru
      _
    // Predicated region
    $region22: #{forward.1} parent=1 // pred_check
      _
    $region23: #{forward.1} parent=1 // pred_check_branch
      %46 = sbr.rel (0) target = $region25
    $region24: #{forward.1} parent=1 // pred_region
      _
    $region25: #{forward.1} parent=1 // pred_fallthru
      _
    // Predicated region
    $region26: #{forward.1} parent=1 // pred_check
      _
    $region27: #{forward.1} parent=1 // pred_check_branch
      %48 = sbr.rel (0) target = $region29
    $region28: #{forward.1} parent=1 // pred_region
      _
    $region29: #{forward.1} parent=1 // pred_fallthru
      _
    // Predicated region
    $region30: #{forward.1} parent=1 // pred_check
      _
    $region31: #{forward.1} parent=1 // pred_check_branch
      %50 = sbr.rel (0) target = $region33
    $region32: #{forward.1} parent=1 // pred_region
      _
    $region33: #{forward.1} parent=1 // pred_fallthru
      _
    // Predicated region
    $region34: #{forward.1} parent=1 // pred_check
      _
    $region35: #{forward.1} parent=1 // pred_check_branch
      %52 = sbr.rel (0) target = $region37
    $region36: #{forward.1} parent=1 // pred_region
      %53 = dma.done [#allocation3], 1024
    $region37: #{forward.1} parent=1 // pred_fallthru
      _
    // Predicated region
    $region38: #{forward.1} parent=1 // pred_check
      _
    $region39: #{forward.1} parent=1 // pred_check_branch
      %55 = sbr.rel (0) target = $region41
    $region40: #{forward.1} parent=1 // pred_region
      %56 = dma.done [#allocation5], 1024
    $region41: #{forward.1} parent=1 // pred_fallthru
      _
    %v58 = vld [vmem:[%s0] sm:$0xf]
    %v59 = vld [vmem:[%s0 + $0x4] sm:$0xf]
    %v60 = vld [vmem:[%s1] sm:$0xf]
    %v61 = vld [vmem:[%s1 + $0x4] sm:$0xf]
    %v62 = vld [vmem:[#allocation2] sm:$0xf]
    %v63 = vld [vmem:[#allocation2 + $0x4] sm:$0xf]
    %v64 = vld [vmem:[#allocation2 + $0x8] sm:$0xf]
    %v65 = vld [vmem:[#allocation2 + $0xc] sm:$0xf]
    %v66 = vld [vmem:[#allocation2 + $0x10] sm:$0xf]
    %v67 = vld [vmem:[#allocation2 + $0x14] sm:$0xf]
    %v68 = vld [vmem:[#allocation2 + $0x18] sm:$0xf]
    %v69 = vld [vmem:[#allocation2 + $0x1c] sm:$0xf]
    %v70 = vld [vmem:[#allocation2 + $0x20] sm:$0xf]
    %v71 = vld [vmem:[#allocation2 + $0x24] sm:$0xf]
    %v72 = vld [vmem:[#allocation2 + $0x28] sm:$0xf]
    %v73 = vld [vmem:[#allocation2 + $0x2c] sm:$0xf]
    %v74 = vld [vmem:[#allocation2 + $0x30] sm:$0xf]
    %v75 = vld [vmem:[#allocation2 + $0x34] sm:$0xf]
    %v76 = vld [vmem:[#allocation2 + $0x38] sm:$0xf]
    %v77 = vld [vmem:[#allocation2 + $0x3c] sm:$0xf]
    %v78 = vld [vmem:[%s3] sm:$0x1]
    %v81 = vunpack.c.l.b16 %v60
    %v82 = vunpack.c.l.b16 %v61
    %v83 = vpack.c.b16 %v82, %v81
    %v101 = vunpack.c.l.b16 %v62
    %v102 = vunpack.c.l.b16 %v63
    %v103 = vunpack.c.l.b16 %v64
    %v104 = vunpack.c.l.b16 %v65
    %v105 = vunpack.c.l.b16 %v66
    %v106 = vunpack.c.l.b16 %v67
    %v107 = vunpack.c.l.b16 %v68
    %v108 = vunpack.c.l.b16 %v69
    %v109 = vunpack.c.l.b16 %v70
    %v110 = vunpack.c.l.b16 %v71
    %v111 = vunpack.c.l.b16 %v72
    %v112 = vunpack.c.l.b16 %v73
    %v113 = vunpack.c.l.b16 %v74
    %v114 = vunpack.c.l.b16 %v75
    %v115 = vunpack.c.l.b16 %v76
    %v116 = vunpack.c.l.b16 %v77
    %v117 = vpack.c.b16 %v102, %v101
    %v118 = vpack.c.b16 %v104, %v103
    %v119 = vpack.c.b16 %v106, %v105
    %v120 = vpack.c.b16 %v108, %v107
    %v121 = vpack.c.b16 %v110, %v109
    %v122 = vpack.c.b16 %v112, %v111
    %v123 = vpack.c.b16 %v114, %v113
    %v124 = vpack.c.b16 %v116, %v115
    %133 = vmatprep.subr.bf16.mxu0 0
    %134 = vmatpush1.bf16.msra.mxu0 %v117
    %135 = vmatprep.subr.bf16.mxu0 0
    %136 = vmatpush1.bf16.msra.mxu0 %v118
    %137 = vmatprep.subr.bf16.mxu0 0
    %138 = vmatpush1.bf16.msra.mxu0 %v119
    %139 = vmatprep.subr.bf16.mxu0 0
    %140 = vmatpush1.bf16.msra.mxu0 %v120
    %141 = vmatprep.subr.bf16.mxu0 0
    %142 = vmatpush1.bf16.msra.mxu0 %v121
    %143 = vmatprep.subr.bf16.mxu0 0
    %144 = vmatpush1.bf16.msra.mxu0 %v122
    %145 = vmatprep.subr.bf16.mxu0 0
    %146 = vmatpush1.bf16.msra.mxu0 %v123
    %147 = vmatprep.subr.bf16.mxu0 0
    %148 = vmatpush1.bf16.msra.mxu0 %v124
    %149 = vmatprep.subr.bf16.mxu0 0
    %150 = vmatpush1.bf16.msra.mxu0 0
    %151 = vmatprep.subr.bf16.mxu0 0
    %152 = vmatpush1.bf16.msra.mxu0 0
    %153 = vmatprep.subr.bf16.mxu0 0
    %154 = vmatpush1.bf16.msra.mxu0 0
    %155 = vmatprep.subr.bf16.mxu0 0
    %156 = vmatpush1.bf16.msra.mxu0 0
    %157 = vmatprep.subr.bf16.mxu0 0
    %158 = vmatpush1.bf16.msra.mxu0 0
    %159 = vmatprep.subr.bf16.mxu0 0
    %160 = vmatpush1.bf16.msra.mxu0 0
    %161 = vmatprep.subr.bf16.mxu0 0
    %162 = vmatpush1.bf16.msra.mxu0 0
    %163 = vmatprep.subr.bf16.mxu0 0
    %164 = vmatpush1.bf16.msra.mxu0 0
    %165 = vmatprep.mubr.bf16.mxu0 0
    %166 = vmatmul.mubr.bf16.gmra.mrb[0].mxu0 %v83
    %v167 = vpop.f32.mrb[0].mxu0
    %v168 = vadd.f32 0.0, %v167
    %v169 = vpop.f32.mrb[0].mxu0
    %v170 = vpop.f32.mrb[0].mxu0
    %v171 = vadd.f32 0.0, %v170
    %v172 = vpop.f32.mrb[0].mxu0
    %173 = vdwg.mxu0
    %v174 = vpack.c.bf16 %v171, %v168
    %v176 = vlaneseq
    %v177 = vshrl.u32 %v176, 7
    %v178 = vsub.s32 0, %v177
    %v179 = vrot.slane %v78, %v178
    %v183 = vunpack.c.l.b16 %v58
    %v184 = vunpack.c.l.b16 %v59
    %v185 = vpack.c.b16 %v184, %v183
    %vm186 = vcmask 130048
    %v188 = vsel %vm186, %v185, 0
    %190 = vmatprep.subr.bf16.mxu0 0
    %191 = vmatpush1.bf16.msra.mxu0 %v174
    %192 = vmatprep.subr.bf16.mxu0 0
    %193 = vmatpush1.bf16.msra.mxu0 0
    %194 = vmatprep.subr.bf16.mxu0 0
    %195 = vmatpush1.bf16.msra.mxu0 0
    %196 = vmatprep.subr.bf16.mxu0 0
    %197 = vmatpush1.bf16.msra.mxu0 0
    %198 = vmatprep.subr.bf16.mxu0 0
    %199 = vmatpush1.bf16.msra.mxu0 0
    %200 = vmatprep.subr.bf16.mxu0 0
    %201 = vmatpush1.bf16.msra.mxu0 0
    %202 = vmatprep.subr.bf16.mxu0 0
    %203 = vmatpush1.bf16.msra.mxu0 0
    %204 = vmatprep.subr.bf16.mxu0 0
    %205 = vmatpush1.bf16.msra.mxu0 0
    %206 = vmatprep.subr.bf16.mxu0 0
    %207 = vmatpush1.bf16.msra.mxu0 0
    %208 = vmatprep.subr.bf16.mxu0 0
    %209 = vmatpush1.bf16.msra.mxu0 0
    %210 = vmatprep.subr.bf16.mxu0 0
    %211 = vmatpush1.bf16.msra.mxu0 0
    %212 = vmatprep.subr.bf16.mxu0 0
    %213 = vmatpush1.bf16.msra.mxu0 0
    %214 = vmatprep.subr.bf16.mxu0 0
    %215 = vmatpush1.bf16.msra.mxu0 0
    %216 = vmatprep.subr.bf16.mxu0 0
    %217 = vmatpush1.bf16.msra.mxu0 0
    %218 = vmatprep.subr.bf16.mxu0 0
    %219 = vmatpush1.bf16.msra.mxu0 0
    %220 = vmatprep.subr.bf16.mxu0 0
    %221 = vmatpush1.bf16.msra.mxu0 0
    %222 = vmatprep.mubr.bf16.mxu0 0
    %223 = vmatmul.mubr.bf16.gmra.mrb[0].mxu0 %v188
    %v224 = vpop.f32.mrb[0].mxu0
    %v225 = vadd.f32 %v179, %v224
    %v226 = vpop.f32.mrb[0].mxu0
    %v227 = vpop.f32.mrb[0].mxu0
    %v228 = vadd.f32 %v179, %v227
    %v229 = vpop.f32.mrb[0].mxu0
    %230 = vdwg.mxu0
    %v231 = vmax.f32 %v225, 0.0
    %v232 = vmax.f32 %v228, 0.0
    %v233 = vpack.c.bf16 %v232, %v231
    %v234 = vld [vmem:[#allocation4] sm:$0xf]
    %v235 = vld [vmem:[#allocation4 + $0x4] sm:$0xf]
    %v236 = vld [vmem:[#allocation4 + $0x8] sm:$0xf]
    %v237 = vld [vmem:[#allocation4 + $0xc] sm:$0xf]
    %v238 = vld [vmem:[#allocation4 + $0x10] sm:$0xf]
    %v239 = vld [vmem:[#allocation4 + $0x14] sm:$0xf]
    %v240 = vld [vmem:[#allocation4 + $0x18] sm:$0xf]
    %v241 = vld [vmem:[#allocation4 + $0x1c] sm:$0xf]
    %v242 = vld [vmem:[#allocation4 + $0x20] sm:$0xf]
    %v243 = vld [vmem:[#allocation4 + $0x24] sm:$0xf]
    %v244 = vld [vmem:[#allocation4 + $0x28] sm:$0xf]
    %v245 = vld [vmem:[#allocation4 + $0x2c] sm:$0xf]
    %v246 = vld [vmem:[#allocation4 + $0x30] sm:$0xf]
    %v247 = vld [vmem:[#allocation4 + $0x34] sm:$0xf]
    %v248 = vld [vmem:[#allocation4 + $0x38] sm:$0xf]
    %v249 = vld [vmem:[#allocation4 + $0x3c] sm:$0xf]
    %v250 = vld [vmem:[%s5] sm:$0x1]
    %v267 = vunpack.c.l.b16 %v234
    %v268 = vunpack.c.l.b16 %v235
    %v269 = vunpack.c.l.b16 %v236
    %v270 = vunpack.c.l.b16 %v237
    %v271 = vunpack.c.l.b16 %v238
    %v272 = vunpack.c.l.b16 %v239
    %v273 = vunpack.c.l.b16 %v240
    %v274 = vunpack.c.l.b16 %v241
    %v275 = vunpack.c.l.b16 %v242
    %v276 = vunpack.c.l.b16 %v243
    %v277 = vunpack.c.l.b16 %v244
    %v278 = vunpack.c.l.b16 %v245
    %v279 = vunpack.c.l.b16 %v246
    %v280 = vunpack.c.l.b16 %v247
    %v281 = vunpack.c.l.b16 %v248
    %v282 = vunpack.c.l.b16 %v249
    %v283 = vpack.c.b16 %v268, %v267
    %v284 = vpack.c.b16 %v270, %v269
    %v285 = vpack.c.b16 %v272, %v271
    %v286 = vpack.c.b16 %v274, %v273
    %v287 = vpack.c.b16 %v276, %v275
    %v288 = vpack.c.b16 %v278, %v277
    %v289 = vpack.c.b16 %v280, %v279
    %v290 = vpack.c.b16 %v282, %v281
    %299 = vmatprep.subr.bf16.mxu0 0
    %300 = vmatpush1.bf16.msra.mxu0 %v283
    %301 = vmatprep.subr.bf16.mxu0 0
    %302 = vmatpush1.bf16.msra.mxu0 %v284
    %303 = vmatprep.subr.bf16.mxu0 0
    %304 = vmatpush1.bf16.msra.mxu0 %v285
    %305 = vmatprep.subr.bf16.mxu0 0
    %306 = vmatpush1.bf16.msra.mxu0 %v286
    %307 = vmatprep.subr.bf16.mxu0 0
    %308 = vmatpush1.bf16.msra.mxu0 %v287
    %309 = vmatprep.subr.bf16.mxu0 0
    %310 = vmatpush1.bf16.msra.mxu0 %v288
    %311 = vmatprep.subr.bf16.mxu0 0
    %312 = vmatpush1.bf16.msra.mxu0 %v289
    %313 = vmatprep.subr.bf16.mxu0 0
    %314 = vmatpush1.bf16.msra.mxu0 %v290
    %315 = vmatprep.subr.bf16.mxu0 0
    %316 = vmatpush1.bf16.msra.mxu0 0
    %317 = vmatprep.subr.bf16.mxu0 0
    %318 = vmatpush1.bf16.msra.mxu0 0
    %319 = vmatprep.subr.bf16.mxu0 0
    %320 = vmatpush1.bf16.msra.mxu0 0
    %321 = vmatprep.subr.bf16.mxu0 0
    %322 = vmatpush1.bf16.msra.mxu0 0
    %323 = vmatprep.subr.bf16.mxu0 0
    %324 = vmatpush1.bf16.msra.mxu0 0
    %325 = vmatprep.subr.bf16.mxu0 0
    %326 = vmatpush1.bf16.msra.mxu0 0
    %327 = vmatprep.subr.bf16.mxu0 0
    %328 = vmatpush1.bf16.msra.mxu0 0
    %329 = vmatprep.subr.bf16.mxu0 0
    %330 = vmatpush1.bf16.msra.mxu0 0
    %331 = vmatprep.mubr.bf16.mxu0 0
    %332 = vmatmul.mubr.bf16.gmra.mrb[0].mxu0 %v233
    %v333 = vpop.f32.mrb[0].mxu0
    %v334 = vadd.f32 0.0, %v333
    %v335 = vpop.f32.mrb[0].mxu0
    %v336 = vpop.f32.mrb[0].mxu0
    %v337 = vadd.f32 0.0, %v336
    %v338 = vpop.f32.mrb[0].mxu0
    %339 = vdwg.mxu0
    %v340 = vpack.c.bf16 %v337, %v334
    %v342 = vlaneseq
    %v343 = vshrl.u32 %v342, 7
    %v344 = vsub.s32 0, %v343
    %v345 = vrot.slane %v250, %v344
    %347 = vmatprep.subr.bf16.mxu0 0
    %348 = vmatpush1.bf16.msra.mxu0 %v340
    %349 = vmatprep.subr.bf16.mxu0 0
    %350 = vmatpush1.bf16.msra.mxu0 0
    %351 = vmatprep.subr.bf16.mxu0 0
    %352 = vmatpush1.bf16.msra.mxu0 0
    %353 = vmatprep.subr.bf16.mxu0 0
    %354 = vmatpush1.bf16.msra.mxu0 0
    %355 = vmatprep.subr.bf16.mxu0 0
    %356 = vmatpush1.bf16.msra.mxu0 0
    %357 = vmatprep.subr.bf16.mxu0 0
    %358 = vmatpush1.bf16.msra.mxu0 0
    %359 = vmatprep.subr.bf16.mxu0 0
    %360 = vmatpush1.bf16.msra.mxu0 0
    %361 = vmatprep.subr.bf16.mxu0 0
    %362 = vmatpush1.bf16.msra.mxu0 0
    %363 = vmatprep.subr.bf16.mxu0 0
    %364 = vmatpush1.bf16.msra.mxu0 0
    %365 = vmatprep.subr.bf16.mxu0 0
    %366 = vmatpush1.bf16.msra.mxu0 0
    %367 = vmatprep.subr.bf16.mxu0 0
    %368 = vmatpush1.bf16.msra.mxu0 0
    %369 = vmatprep.subr.bf16.mxu0 0
    %370 = vmatpush1.bf16.msra.mxu0 0
    %371 = vmatprep.subr.bf16.mxu0 0
    %372 = vmatpush1.bf16.msra.mxu0 0
    %373 = vmatprep.subr.bf16.mxu0 0
    %374 = vmatpush1.bf16.msra.mxu0 0
    %375 = vmatprep.subr.bf16.mxu0 0
    %376 = vmatpush1.bf16.msra.mxu0 0
    %377 = vmatprep.subr.bf16.mxu0 0
    %378 = vmatpush1.bf16.msra.mxu0 0
    %379 = vmatprep.mubr.bf16.mxu0 0
    %380 = vmatmul.mubr.bf16.gmra.mrb[0].mxu0 %v188
    %v381 = vpop.f32.mrb[0].mxu0
    %v382 = vadd.f32 %v345, %v381
    %v383 = vpop.f32.mrb[0].mxu0
    %v384 = vpop.f32.mrb[0].mxu0
    %v385 = vadd.f32 %v345, %v384
    %v386 = vpop.f32.mrb[0].mxu0
    %387 = vdwg.mxu0
    %v388 = vmax.f32 %v382, 0.0
    %v389 = vmax.f32 %v385, 0.0
    %v390 = vpack.c.bf16 %v389, %v388
    %v391 = vld [vmem:[%s6] sm:$0xf]
    %v392 = vld [vmem:[%s6 + $0x4] sm:$0xf]
    %v393 = vld [vmem:[%s6 + $0x8] sm:$0xf]
    %v394 = vld [vmem:[%s6 + $0xc] sm:$0xf]
    %v395 = vld [vmem:[%s6 + $0x10] sm:$0xf]
    %v396 = vld [vmem:[%s6 + $0x14] sm:$0xf]
    %v397 = vld [vmem:[%s6 + $0x18] sm:$0xf]
    %v398 = vld [vmem:[%s6 + $0x1c] sm:$0xf]
    %v399 = vld [vmem:[%s6 + $0x20] sm:$0xf]
    %v400 = vld [vmem:[%s6 + $0x24] sm:$0xf]
    %v401 = vld [vmem:[%s6 + $0x28] sm:$0xf]
    %v402 = vld [vmem:[%s6 + $0x2c] sm:$0xf]
    %v403 = vld [vmem:[%s6 + $0x30] sm:$0xf]
    %v404 = vld [vmem:[%s6 + $0x34] sm:$0xf]
    %v405 = vld [vmem:[%s6 + $0x38] sm:$0xf]
    %v406 = vld [vmem:[%s6 + $0x3c] sm:$0xf]
    %v407 = vld [vmem:[%s7] sm:$0x1]
    %v424 = vunpack.c.l.b16 %v391
    %v425 = vunpack.c.l.b16 %v392
    %v426 = vunpack.c.l.b16 %v393
    %v427 = vunpack.c.l.b16 %v394
    %v428 = vunpack.c.l.b16 %v395
    %v429 = vunpack.c.l.b16 %v396
    %v430 = vunpack.c.l.b16 %v397
    %v431 = vunpack.c.l.b16 %v398
    %v432 = vunpack.c.l.b16 %v399
    %v433 = vunpack.c.l.b16 %v400
    %v434 = vunpack.c.l.b16 %v401
    %v435 = vunpack.c.l.b16 %v402
    %v436 = vunpack.c.l.b16 %v403
    %v437 = vunpack.c.l.b16 %v404
    %v438 = vunpack.c.l.b16 %v405
    %v439 = vunpack.c.l.b16 %v406
    %v440 = vpack.c.b16 %v425, %v424
    %v441 = vpack.c.b16 %v427, %v426
    %v442 = vpack.c.b16 %v429, %v428
    %v443 = vpack.c.b16 %v431, %v430
    %v444 = vpack.c.b16 %v433, %v432
    %v445 = vpack.c.b16 %v435, %v434
    %v446 = vpack.c.b16 %v437, %v436
    %v447 = vpack.c.b16 %v439, %v438
    %456 = vmatprep.subr.bf16.mxu0 0
    %457 = vmatpush1.bf16.msra.mxu0 %v440
    %458 = vmatprep.subr.bf16.mxu0 0
    %459 = vmatpush1.bf16.msra.mxu0 %v441
    %460 = vmatprep.subr.bf16.mxu0 0
    %461 = vmatpush1.bf16.msra.mxu0 %v442
    %462 = vmatprep.subr.bf16.mxu0 0
    %463 = vmatpush1.bf16.msra.mxu0 %v443
    %464 = vmatprep.subr.bf16.mxu0 0
    %465 = vmatpush1.bf16.msra.mxu0 %v444
    %466 = vmatprep.subr.bf16.mxu0 0
    %467 = vmatpush1.bf16.msra.mxu0 %v445
    %468 = vmatprep.subr.bf16.mxu0 0
    %469 = vmatpush1.bf16.msra.mxu0 %v446
    %470 = vmatprep.subr.bf16.mxu0 0
    %471 = vmatpush1.bf16.msra.mxu0 %v447
    %472 = vmatprep.subr.bf16.mxu0 0
    %473 = vmatpush1.bf16.msra.mxu0 0
    %474 = vmatprep.subr.bf16.mxu0 0
    %475 = vmatpush1.bf16.msra.mxu0 0
    %476 = vmatprep.subr.bf16.mxu0 0
    %477 = vmatpush1.bf16.msra.mxu0 0
    %478 = vmatprep.subr.bf16.mxu0 0
    %479 = vmatpush1.bf16.msra.mxu0 0
    %480 = vmatprep.subr.bf16.mxu0 0
    %481 = vmatpush1.bf16.msra.mxu0 0
    %482 = vmatprep.subr.bf16.mxu0 0
    %483 = vmatpush1.bf16.msra.mxu0 0
    %484 = vmatprep.subr.bf16.mxu0 0
    %485 = vmatpush1.bf16.msra.mxu0 0
    %486 = vmatprep.subr.bf16.mxu0 0
    %487 = vmatpush1.bf16.msra.mxu0 0
    %488 = vmatprep.mubr.bf16.mxu0 0
    %489 = vmatmul.mubr.bf16.gmra.mrb[0].mxu0 %v390
    %v490 = vpop.f32.mrb[0].mxu0
    %v491 = vadd.f32 0.0, %v490
    %v492 = vpop.f32.mrb[0].mxu0
    %v493 = vpop.f32.mrb[0].mxu0
    %v494 = vadd.f32 0.0, %v493
    %v495 = vpop.f32.mrb[0].mxu0
    %496 = vdwg.mxu0
    %v497 = vpack.c.bf16 %v494, %v491
    %v499 = vlaneseq
    %v500 = vshrl.u32 %v499, 7
    %v501 = vsub.s32 0, %v500
    %v502 = vrot.slane %v407, %v501
    %504 = vmatprep.subr.bf16.mxu0 0
    %505 = vmatpush1.bf16.msra.mxu0 %v497
    %506 = vmatprep.subr.bf16.mxu0 0
    %507 = vmatpush1.bf16.msra.mxu0 0
    %508 = vmatprep.subr.bf16.mxu0 0
    %509 = vmatpush1.bf16.msra.mxu0 0
    %510 = vmatprep.subr.bf16.mxu0 0
    %511 = vmatpush1.bf16.msra.mxu0 0
    %512 = vmatprep.subr.bf16.mxu0 0
    %513 = vmatpush1.bf16.msra.mxu0 0
    %514 = vmatprep.subr.bf16.mxu0 0
    %515 = vmatpush1.bf16.msra.mxu0 0
    %516 = vmatprep.subr.bf16.mxu0 0
    %517 = vmatpush1.bf16.msra.mxu0 0
    %518 = vmatprep.subr.bf16.mxu0 0
    %519 = vmatpush1.bf16.msra.mxu0 0
    %520 = vmatprep.subr.bf16.mxu0 0
    %521 = vmatpush1.bf16.msra.mxu0 0
    %522 = vmatprep.subr.bf16.mxu0 0
    %523 = vmatpush1.bf16.msra.mxu0 0
    %524 = vmatprep.subr.bf16.mxu0 0
    %525 = vmatpush1.bf16.msra.mxu0 0
    %526 = vmatprep.subr.bf16.mxu0 0
    %527 = vmatpush1.bf16.msra.mxu0 0
    %528 = vmatprep.subr.bf16.mxu0 0
    %529 = vmatpush1.bf16.msra.mxu0 0
    %530 = vmatprep.subr.bf16.mxu0 0
    %531 = vmatpush1.bf16.msra.mxu0 0
    %532 = vmatprep.subr.bf16.mxu0 0
    %533 = vmatpush1.bf16.msra.mxu0 0
    %534 = vmatprep.subr.bf16.mxu0 0
    %535 = vmatpush1.bf16.msra.mxu0 0
    %536 = vmatprep.mubr.bf16.mxu0 0
    %537 = vmatmul.mubr.bf16.gmra.mrb[0].mxu0 %v188
    %v538 = vpop.f32.mrb[0].mxu0
    %v539 = vadd.f32 %v502, %v538
    %v540 = vpop.f32.mrb[0].mxu0
    %v541 = vpop.f32.mrb[0].mxu0
    %v542 = vadd.f32 %v502, %v541
    %v543 = vpop.f32.mrb[0].mxu0
    %544 = vdwg.mxu0
    %545 = vst [vmem:[%s8] sm:$0xff] %v539
    %546 = vst [vmem:[%s8 + $0x8] sm:$0xff] %v542
    // Predicated region
    $region42: #{forward.1} parent=1 // pred_check
      _
    $region43: #{forward.1} parent=1 // pred_check_branch
      %548 = sbr.rel (0) target = $region45
    $region44: #{forward.1} parent=1 // pred_region
      _
    $region45: #{forward.1} parent=1 // pred_fallthru
      _
    // Predicated region
    $region46: #{forward.1} parent=1 // pred_check
      _
    $region47: #{forward.1} parent=1 // pred_check_branch
      %550 = sbr.rel (0) target = $region49
    $region48: #{forward.1} parent=1 // pred_region
      _
    $region49: #{forward.1} parent=1 // pred_fallthru
      _
    %551 = vsyncpa [#allocation3], 1
    %552 = vsyncpa [#allocation5], 1

</llo_original>
